<compile_context>
chip_gen: v7x
topology: tpu7x:2x2x1
jax: 0.10.0
libtpu: 0.0.40
codegen_flags: <defaults>
</compile_context>

<pallas_src>
import functools

import jax
import jax.numpy as jnp
from jax.experimental import pallas as pl
from jax.experimental.pallas import tpu as pltpu

_OPS = {
    "Add": lambda a, b: a + b,
    "Sub": lambda a, b: a - b,
    "Mul": lambda a, b: a * b,
    "Div": lambda a, b: a / b,
}

_LANE = 128
_TARGET_BLOCK_BYTES = 2 << 20  # ~2 MiB per block buffer


def _round_up(n: int, m: int) -> int:
    return ((n + m - 1) // m) * m


def _binary_scalar_kernel(x_ref, o_ref, *, op, value):
    # x_ref / o_ref: (block_rows, 128) VMEM tiles.  `value` is a compile-time
    # Python scalar (weakly typed), so the compute stays in x's dtype for
    # Add/Sub/Mul on integer inputs and in f32 for Div.
    o_ref[...] = op(x_ref[...], value).astype(o_ref.dtype)


def onnx_binary_math_op(x: jnp.ndarray, value, operation_type: str = "Add",
                        donate: bool = False):
    """Pallas implementation of OnnxBinaryMathOperation_SI.forward (scalar value)."""
    # TODO(synk): only a scalar `value` is supported (the _SI variant); a
    # broadcastable tensor-valued constant is not implemented here.
    orig_shape = x.shape
    total = x.size
    if total == 0:
        return x

    if operation_type == "Div" and float(value) != 0.0:
        # Hoist the reciprocal out of the kernel: a per-element divide would go
        # through the single EUP slot; a scalar reciprocal + VPU multiply is free.
        op = _OPS["Mul"]
        v = 1.0 / float(value)
    else:
        op = _OPS[operation_type]
        # Keep Python int constants as ints so integer tensors stay integer
        # (weak typing); floats pass through unchanged.
        v = value if isinstance(value, (int, float)) else float(value)

    itemsize = jnp.dtype(x.dtype).itemsize
    # Dtype-aware native sublane tile: 8 rows (f32), 16 (bf16/f16), 32 (int8/fp8).
    pack = max(32 // max(itemsize, 1), 8)

    xf = x.reshape(-1)
    pad = (-total) % _LANE
    if pad:
        # Rare fallback: element count not a multiple of 128 lanes.
        xf = jnp.concatenate([xf, jnp.zeros((pad,), x.dtype)])
    rows = xf.size // _LANE
    x2 = xf.reshape(rows, _LANE)

    # Large lane-dense blocks (~2 MiB), clamped to the data size, rounded to the
    # native packed sublane tile.  Double-buffered in+out stays well under the
    # scoped VMEM limit on v5e / v6e / v7x.
    target_rows = max(pack, _TARGET_BLOCK_BYTES // (_LANE * itemsize))
    block_rows = min(_round_up(target_rows, pack), _round_up(rows, pack))

    grid = (pl.cdiv(rows, block_rows),)

    extra_kwargs = {}
    if donate:
        # Reuse the input HBM buffer for the output (caller must donate x).
        extra_kwargs["input_output_aliases"] = {0: 0}

    out2 = pl.pallas_call(
        functools.partial(_binary_scalar_kernel, op=op, value=v),
        out_shape=jax.ShapeDtypeStruct((rows, _LANE), x.dtype),
        grid=grid,
        in_specs=[pl.BlockSpec((block_rows, _LANE), lambda i: (i, 0))],
        out_specs=pl.BlockSpec((block_rows, _LANE), lambda i: (i, 0)),
        compiler_params=pltpu.CompilerParams(
            dimension_semantics=("parallel",),  # shards the grid across TCs on v7x
        ),
        **extra_kwargs,
    )(x2)

    out = out2.reshape(-1)
    if pad:
        out = out[:total]
    return out.reshape(orig_shape)


if __name__ == "__main__":
    key = jax.random.PRNGKey(0)
    x = jax.random.normal(key, (2, 4, 16, 16), dtype=jnp.float32)

    # Deterministic "weight" for the module: the stored scalar constant operand.
    value = 2.5

    ok = True
    for op_name, ref_fn in _OPS.items():
        out = onnx_binary_math_op(x, value, operation_type=op_name)
        out = jax.block_until_ready(out)
        ref = ref_fn(x, jnp.float32(value))
        if out.shape != ref.shape or not jnp.allclose(out, ref, rtol=1e-6, atol=1e-6):
            ok = False
            print(f"MISMATCH for {op_name}")

    if ok:
        print("KERNEL_OK")
</pallas_src>

<mosaic_0001>
module attributes {stable_mosaic.version = 11 : i64} {
  func.func @_binary_scalar_kernel(%arg0: i32, %arg1: memref<16x128xf32, #tpu.memory_space<vmem>>, %arg2: memref<16x128xf32, #tpu.memory_space<vmem>>) attributes {dimension_semantics = [#tpu.dimension_semantics<parallel>], iteration_bounds = array<i64: 1>, scalar_prefetch = 0 : i64, scratch_operands = 0 : i64, tpu.core_type = #tpu.core_type<tc>, window_params = [{transform_indices = @transform_0, window_bounds = array<i64: 16, 128>}, {transform_indices = @transform_1, window_bounds = array<i64: 16, 128>}]} {
    %c0 = arith.constant 0 : index
    %c0_0 = arith.constant 0 : index
    %0 = vector.load %arg1[%c0, %c0_0] : memref<16x128xf32, #tpu.memory_space<vmem>>, vector<16x128xf32>
    %cst = arith.constant 2.500000e+00 : f32
    %1 = vector.broadcast %cst : f32 to vector<16x128xf32>
    %2 = arith.addf %0, %1 : vector<16x128xf32>
    %c0_1 = arith.constant 0 : index
    %c0_2 = arith.constant 0 : index
    %3 = vector.load %arg2[%c0_1, %c0_2] : memref<16x128xf32, #tpu.memory_space<vmem>>, vector<16x128xf32>
    tpu.vector_store %arg2[%c0_1, %c0_2], %2 {strides = array<i32>} : memref<16x128xf32, #tpu.memory_space<vmem>>, vector<16x128xf32>,
    return
  }
  func.func @transform_0(%arg0: i32) -> (i32, i32) {
    %c0_i32 = arith.constant 0 : i32
    %c0_i32_0 = arith.constant 0 : i32
    return %arg0, %c0_i32 : i32, i32
  }
  func.func @transform_1(%arg0: i32) -> (i32, i32) {
    %c0_i32 = arith.constant 0 : i32
    %c0_i32_0 = arith.constant 0 : i32
    return %arg0, %c0_i32 : i32, i32
  }
}

</mosaic_0001>

<llo_original>
// kernel: tpu_custom_call.1
$region0: #{tpu_custom_call.1}
  #allocation0 [shape = 'u32[]', space=smem, size = 0x4, offset = 0x4, fixed_abs, tag = 'smem constant byte address 0x4 - core index']
  #allocation1 [shape = 'u32[144,128]{1,0:T(1,128)}', space=vmem, size = 0x12000, scoped, tag = 'internal scratch']
  %s0 = inlined_call_operand.hbm [shape: f32[16,128], index: 0, kind: input, shape index: {}]
  %s1 = inlined_call_operand.hbm [shape: f32[16,128], index: 1, kind: output, shape index: {}]
  %s2 = sld [smem:[#allocation0]]
  $region18: #{tpu_custom_call.1} parent=0
    _
  %s4 = ssub.s32 1, %s2
  %s5 = scalar_select 0, %s4, %s2
  $region1: #{tpu_custom_call.1} parent=0
    #allocation2 [shape = 'u8[8192]{0}', space=vmem, size = 0x2000, scoped, tag = 'input window, operand 0, single buffered']
    #allocation3 [shape = 's32[1]{0}', space=sflag, size = 0x4, scoped, tag = 'scoped memory for tpu_custom_call.1']
    #allocation4 [shape = 's32[1]{0}', space=sflag, size = 0x4, scoped, tag = 'scoped memory for tpu_custom_call.1']
    #allocation5 [shape = 'u8[8192]{0}', space=vmem, size = 0x2000, scoped, tag = 'output window, operand 0, single buffered']
    %6 = vsyncpa [#allocation3], 0
    %7 = vsyncpa [#allocation4], 0
    // Predicated region
    $region2: #{tpu_custom_call.1} parent=1 // pred_check
      _
    $region3: #{tpu_custom_call.1} parent=1 // pred_check_branch
      %9 = sbr.rel (0) target = $region5
    $region4: #{tpu_custom_call.1} parent=1 // pred_region
      %s11 = ssub.s32 256, 256
      %12 = vsyncadd [#allocation3], %s11
      %s13 = sshll.u32 [#allocation2], 4
      %s14 = int_to_ptr.vmem [resolvable:$true] %s13
      %19 = dma.hbm_to_vmem [thread:$0]  %s0, 256, %s14, [#allocation3], 128, 128, 8
    $region5: #{tpu_custom_call.1} parent=1 // pred_fallthru
      _
    // Predicated region
    $region6: #{tpu_custom_call.1} parent=1 // pred_check
      _
    $region7: #{tpu_custom_call.1} parent=1 // pred_check_branch
      %21 = sbr.rel (0) target = $region9
    $region8: #{tpu_custom_call.1} parent=1 // pred_region
      %22 = dma.done [#allocation3], 256
    $region9: #{tpu_custom_call.1} parent=1 // pred_fallthru
      _
    %v23 = vld [vmem:[#allocation2] sm:$0xff]
    %v24 = vld [vmem:[#allocation2 + $0x8] sm:$0xff]
    %v25 = vadd.f32 %v23, 2.5
    %v26 = vadd.f32 %v24, 2.5
    %27 = vst [vmem:[#allocation5] sm:$0xff] %v25
    %28 = vst [vmem:[#allocation5 + $0x8] sm:$0xff] %v26
    // Predicated region
    $region10: #{tpu_custom_call.1} parent=1 // pred_check
      _
    $region11: #{tpu_custom_call.1} parent=1 // pred_check_branch
      %30 = sbr.rel (0) target = $region13
    $region12: #{tpu_custom_call.1} parent=1 // pred_region
      %s32 = ssub.s32 256, 256
      %33 = vsyncadd [#allocation4], %s32
      %s34 = sshll.u32 [#allocation5], 4
      %s35 = int_to_ptr.vmem [resolvable:$true] %s34
      %40 = dma.vmem_to_hbm [thread:$0]  %s35, 256, %s1, [#allocation4], 128, 128, 8
    $region13: #{tpu_custom_call.1} parent=1 // pred_fallthru
      _
    // Predicated region
    $region14: #{tpu_custom_call.1} parent=1 // pred_check
      _
    $region15: #{tpu_custom_call.1} parent=1 // pred_check_branch
      %42 = sbr.rel (0) target = $region17
    $region16: #{tpu_custom_call.1} parent=1 // pred_region
      %43 = dma.done [#allocation4], 256
    $region17: #{tpu_custom_call.1} parent=1 // pred_fallthru
      _
    %44 = vsyncpa [#allocation3], 1
    %45 = vsyncpa [#allocation4], 1

</llo_original>
